<compile_context>
chip_gen: v7x
topology: tpu7x:2x2x1
jax: 0.10.0
libtpu: 0.0.40
codegen_flags: <defaults>
</compile_context>

<pallas_src>
import functools

import jax
import jax.numpy as jnp
from jax.experimental import pallas as pl
from jax.experimental.pallas import tpu as pltpu


def _round_up(x: int, m: int) -> int:
    return ((x + m - 1) // m) * m


def _mape_kernel(f_ref, t_ref, m_ref, o_ref, acc_ref, *, B, T, TB, TT):
    i = pl.program_id(0)  # row-tile index ("parallel")
    j = pl.program_id(1)  # col-tile index ("arbitrary" / reduction)

    # Init the per-row-tile accumulator at the start of each column sweep.
    @pl.when(j == 0)
    def _():
        acc_ref[...] = jnp.zeros_like(acc_ref)

    # Cast in-kernel so HBM traffic stays at the native input dtype.
    f = f_ref[...].astype(jnp.float32)
    tg = t_ref[...].astype(jnp.float32)
    mk = m_ref[...].astype(jnp.float32)

    # divide_no_nan(mask, target): NaN -> 0, +inf -> 0 (-inf deliberately kept,
    # matching the torch reference).
    w = mk / tg
    w = jnp.where(jnp.isnan(w), jnp.zeros_like(w), w)
    w = jnp.where(w == jnp.inf, jnp.zeros_like(w), w)

    vals = jnp.abs((f - tg) * w)

    # Mask out padded elements when tiles overrun (B, T). Static no-op when the
    # tiles divide the array exactly.
    if (B % TB != 0) or (T % TT != 0):
        rows = jax.lax.broadcasted_iota(jnp.int32, (TB, TT), 0) + i * TB
        cols = jax.lax.broadcasted_iota(jnp.int32, (TB, TT), 1) + j * TT
        valid = (rows < B) & (cols < T)
        vals = jnp.where(valid, vals, jnp.zeros_like(vals))

    # Pure VPU elementwise accumulate; the XLU reduction is deferred to the epilogue.
    acc_ref[...] += vals

    # Epilogue: one full reduce per row tile, written as a lane-dense partial-sum block.
    @pl.when(j == pl.num_programs(1) - 1)
    def _():
        s = jnp.sum(acc_ref[...])
        o_ref[...] = jnp.zeros_like(o_ref) + s


def mape_loss(
    forecast: jax.Array,
    target: jax.Array,
    mask: jax.Array,
    *,
    tile_b: int = 256,
    tile_t: int = 1024,
) -> jax.Array:
    """MAPE loss: mean(|(forecast - target) * divide_no_nan(mask, target)|)."""
    assert forecast.shape == target.shape == mask.shape
    assert forecast.ndim == 2
    B, T = forecast.shape

    # Tile sizes: multiples of the (8, 128) vreg footprint, capped so that
    # 3 inputs x 2 pipeline buffers x tile + f32 accumulator stays well under the
    # smallest scoped-VMEM default across v5e/v6e/v7x.
    TB = min(tile_b, _round_up(B, 8))
    TT = min(tile_t, _round_up(T, 128))
    grid = (pl.cdiv(B, TB), pl.cdiv(T, TT))
    n_row_tiles = grid[0]

    kernel = functools.partial(_mape_kernel, B=B, T=T, TB=TB, TT=TT)
    in_spec = pl.BlockSpec((TB, TT), lambda i, j: (i, j))

    partials = pl.pallas_call(
        kernel,
        out_shape=jax.ShapeDtypeStruct((n_row_tiles, 8, 128), jnp.float32),
        grid=grid,
        in_specs=[in_spec, in_spec, in_spec],
        out_specs=pl.BlockSpec((1, 8, 128), lambda i, j: (i, 0, 0)),
        scratch_shapes=[pltpu.VMEM((TB, TT), jnp.float32)],
        compiler_params=pltpu.CompilerParams(
            dimension_semantics=("parallel", "arbitrary"),
        ),
    )(forecast, target, mask)

    # Tiny cross-row-tile reduce + true mean denominator in the wrapper.
    return jnp.sum(partials[:, 0, 0]) / jnp.float32(B * T)


def _mape_ref(forecast, target, mask):
    # pure-JAX reference for sanity checking
    f = forecast.astype(jnp.float32)
    tg = target.astype(jnp.float32)
    mk = mask.astype(jnp.float32)
    w = mk / tg
    w = jnp.where(jnp.isnan(w), 0.0, w)
    w = jnp.where(w == jnp.inf, 0.0, w)
    return jnp.mean(jnp.abs((f - tg) * w))


if __name__ == "__main__":
    key = jax.random.PRNGKey(0)
    k1, k2, k3 = jax.random.split(key, 3)

    # --- test 1: small (batch, time) shape from the module's convention ---
    B, T = 8, 128
    forecast = jax.random.normal(k1, (B, T), dtype=jnp.float32)
    target = jax.random.normal(k2, (B, T), dtype=jnp.float32)
    # exact zeros in the target so divide_no_nan paths are exercised
    target = target * (jax.random.uniform(k3, (B, T)) > 0.1).astype(jnp.float32)
    mask = (jax.random.uniform(k3, (B, T)) > 0.2).astype(jnp.float32)

    loss = mape_loss(forecast, target, mask)
    jax.block_until_ready(loss)
    ref = _mape_ref(forecast, target, mask)
    assert jnp.allclose(loss, ref, rtol=1e-4, atol=1e-6), (loss, ref)

    # --- test 2: ragged shape + multi-tile grid (exercises padding mask,
    # accumulation over the reduction axis, and per-row-tile partials) ---
    k4, k5, k6 = jax.random.split(jax.random.PRNGKey(1), 3)
    B2, T2 = 13, 300
    f2 = jax.random.normal(k4, (B2, T2), dtype=jnp.float32)
    t2 = jax.random.normal(k5, (B2, T2), dtype=jnp.float32)
    t2 = t2 * (jax.random.uniform(k6, (B2, T2)) > 0.1).astype(jnp.float32)
    m2 = (jax.random.uniform(k6, (B2, T2)) > 0.2).astype(jnp.float32)

    loss2 = mape_loss(f2, t2, m2, tile_b=8, tile_t=128)  # grid (2, 3), padded tiles
    jax.block_until_ready(loss2)
    ref2 = _mape_ref(f2, t2, m2)
    assert jnp.allclose(loss2, ref2, rtol=1e-4, atol=1e-6), (loss2, ref2)

    print("KERNEL_OK")
</pallas_src>

<mosaic_0001>
module attributes {stable_mosaic.version = 11 : i64} {
  func.func @_mape_kernel(%arg0: i32, %arg1: i32, %arg2: memref<8x128xf32, #tpu.memory_space<vmem>>, %arg3: memref<8x128xf32, #tpu.memory_space<vmem>>, %arg4: memref<8x128xf32, #tpu.memory_space<vmem>>, %arg5: memref<1x8x128xf32, #tpu.memory_space<vmem>>, %arg6: memref<8x128xf32, #tpu.memory_space<vmem>>) attributes {dimension_semantics = [#tpu.dimension_semantics<parallel>, #tpu.dimension_semantics<arbitrary>], iteration_bounds = array<i64: 1, 1>, scalar_prefetch = 0 : i64, scratch_operands = 1 : i64, tpu.core_type = #tpu.core_type<tc>, window_params = [{transform_indices = @transform_0, window_bounds = array<i64: 8, 128>}, {transform_indices = @transform_1, window_bounds = array<i64: 8, 128>}, {transform_indices = @transform_2, window_bounds = array<i64: 8, 128>}, {transform_indices = @transform_3, window_bounds = array<i64: 1, 8, 128>}]} {
    %c0_i32 = arith.constant 0 : i32
    %0 = arith.cmpi eq, %arg1, %c0_i32 : i32
    %1 = arith.extui %0 : i1 to i32
    %c0_i32_0 = arith.constant 0 : i32
    %2 = arith.cmpi ne, %1, %c0_i32_0 : i32
    scf.if %2 {
      %cst_14 = arith.constant 0.000000e+00 : f32
      %23 = vector.broadcast %cst_14 : f32 to vector<8x128xf32>
      %c0_15 = arith.constant 0 : index
      %c0_16 = arith.constant 0 : index
      %24 = vector.load %arg6[%c0_15, %c0_16] : memref<8x128xf32, #tpu.memory_space<vmem>>, vector<8x128xf32>
      tpu.vector_store %arg6[%c0_15, %c0_16], %23 {strides = array<i32>} : memref<8x128xf32, #tpu.memory_space<vmem>>, vector<8x128xf32>,
    } else {
    }
    %c0 = arith.constant 0 : index
    %c0_1 = arith.constant 0 : index
    %3 = vector.load %arg2[%c0, %c0_1] : memref<8x128xf32, #tpu.memory_space<vmem>>, vector<8x128xf32>
    %c0_2 = arith.constant 0 : index
    %c0_3 = arith.constant 0 : index
    %4 = vector.load %arg3[%c0_2, %c0_3] : memref<8x128xf32, #tpu.memory_space<vmem>>, vector<8x128xf32>
    %c0_4 = arith.constant 0 : index
    %c0_5 = arith.constant 0 : index
    %5 = vector.load %arg4[%c0_4, %c0_5] : memref<8x128xf32, #tpu.memory_space<vmem>>, vector<8x128xf32>
    %6 = arith.divf %5, %4 : vector<8x128xf32>
    %7 = arith.cmpf one, %6, %6 : vector<8x128xf32>
    %cst = arith.constant 0.000000e+00 : f32
    %8 = vector.broadcast %cst : f32 to vector<8x128xf32>
    %9 = arith.select %7, %8, %6 : vector<8x128xi1>, vector<8x128xf32>
    %cst_6 = arith.constant 0x7F800000 : f32
    %10 = vector.broadcast %cst_6 : f32 to vector<8x128xf32>
    %11 = arith.cmpf oeq, %9, %10 : vector<8x128xf32>
    %cst_7 = arith.constant 0.000000e+00 : f32
    %12 = vector.broadcast %cst_7 : f32 to vector<8x128xf32>
    %13 = arith.select %11, %12, %9 : vector<8x128xi1>, vector<8x128xf32>
    %14 = arith.subf %3, %4 : vector<8x128xf32>
    %15 = arith.mulf %14, %13 : vector<8x128xf32>
    %16 = math.absf %15 : vector<8x128xf32>
    %c0_8 = arith.constant 0 : index
    %c0_9 = arith.constant 0 : index
    %17 = vector.load %arg6[%c0_8, %c0_9] : memref<8x128xf32, #tpu.memory_space<vmem>>, vector<8x128xf32>
    %18 = arith.addf %17, %16 : vector<8x128xf32>
    %c0_10 = arith.constant 0 : index
    %c0_11 = arith.constant 0 : index
    %19 = vector.load %arg6[%c0_10, %c0_11] : memref<8x128xf32, #tpu.memory_space<vmem>>, vector<8x128xf32>
    tpu.vector_store %arg6[%c0_10, %c0_11], %18 {strides = array<i32>} : memref<8x128xf32, #tpu.memory_space<vmem>>, vector<8x128xf32>,
    %c0_i32_12 = arith.constant 0 : i32
    %20 = arith.cmpi eq, %arg1, %c0_i32_12 : i32
    %21 = arith.extui %20 : i1 to i32
    %c0_i32_13 = arith.constant 0 : i32
    %22 = arith.cmpi ne, %21, %c0_i32_13 : i32
    scf.if %22 {
      %c0_14 = arith.constant 0 : index
      %c0_15 = arith.constant 0 : index
      %23 = vector.load %arg6[%c0_14, %c0_15] : memref<8x128xf32, #tpu.memory_space<vmem>>, vector<8x128xf32>
      %24 = vector.shape_cast %23 : vector<8x128xf32> to vector<1x8x128xf32>
      %cst_16 = arith.constant dense<0.000000e+00> : vector<1xf32>
      %25 = vector.multi_reduction <add>, %24, %cst_16 [1, 2] : vector<1x8x128xf32> to vector<1xf32>
      %26 = vector.shape_cast %25 : vector<1xf32> to vector<1x1x1xf32>
      %27 = vector.extract %26[0, 0, 0] : f32 from vector<1x1x1xf32>
      %cst_17 = arith.constant 0.000000e+00 : f32
      %28 = vector.broadcast %cst_17 : f32 to vector<1x8x128xf32>
      %29 = vector.broadcast %27 : f32 to vector<1x8x128xf32>
      %30 = arith.addf %28, %29 : vector<1x8x128xf32>
      %c0_18 = arith.constant 0 : index
      %c0_19 = arith.constant 0 : index
      %c0_20 = arith.constant 0 : index
      %31 = vector.load %arg5[%c0_18, %c0_19, %c0_20] : memref<1x8x128xf32, #tpu.memory_space<vmem>>, vector<1x8x128xf32>
      tpu.vector_store %arg5[%c0_18, %c0_19, %c0_20], %30 {strides = array<i32>} : memref<1x8x128xf32, #tpu.memory_space<vmem>>, vector<1x8x128xf32>,
    } else {
    }
    return
  }
  func.func @transform_0(%arg0: i32, %arg1: i32) -> (i32, i32) {
    %c0_i32 = arith.constant 0 : i32
    return %arg0, %arg1 : i32, i32
  }
  func.func @transform_1(%arg0: i32, %arg1: i32) -> (i32, i32) {
    %c0_i32 = arith.constant 0 : i32
    return %arg0, %arg1 : i32, i32
  }
  func.func @transform_2(%arg0: i32, %arg1: i32) -> (i32, i32) {
    %c0_i32 = arith.constant 0 : i32
    return %arg0, %arg1 : i32, i32
  }
  func.func @transform_3(%arg0: i32, %arg1: i32) -> (i32, i32, i32) {
    %c0_i32 = arith.constant 0 : i32
    %c0_i32_0 = arith.constant 0 : i32
    %c0_i32_1 = arith.constant 0 : i32
    return %arg0, %c0_i32, %c0_i32_0 : i32, i32, i32
  }
}

</mosaic_0001>

<llo_original>
// kernel: tpu_custom_call.1
$region0: #{tpu_custom_call.1}
  #allocation0 [shape = 'u32[]', space=smem, size = 0x4, offset = 0x4, fixed_abs, tag = 'smem constant byte address 0x4 - core index']
  #allocation1 [shape = 'u32[144,128]{1,0:T(1,128)}', space=vmem, size = 0x12000, scoped, tag = 'internal scratch']
  #allocation2 [shape = 'f32[8,128]{1,0:T(8,128)}', space=vmem, size = 0x1000, scoped, tag = 'scratch operand']
  %s0 = inlined_call_operand.hbm [shape: f32[8,128], index: 0, kind: input, shape index: {}]
  %s1 = inlined_call_operand.hbm [shape: f32[8,128], index: 1, kind: input, shape index: {}]
  %s2 = inlined_call_operand.hbm [shape: f32[8,128], index: 2, kind: input, shape index: {}]
  %s3 = inlined_call_operand.hbm [shape: f32[1,8,128], index: 3, kind: output, shape index: {}]
  %s4 = sld [smem:[#allocation0]]
  $region42: #{tpu_custom_call.1} parent=0
    _
  %s6 = ssub.s32 1, %s4
  %s7 = scalar_select 0, %s6, %s4
  $region1: #{tpu_custom_call.1} parent=0
    #allocation3 [shape = 'u8[4096]{0}', space=vmem, size = 0x1000, scoped, tag = 'input window, operand 0, single buffered']
    #allocation4 [shape = 's32[1]{0}', space=sflag, size = 0x4, scoped, tag = 'scoped memory for tpu_custom_call.1']
    #allocation5 [shape = 's32[1]{0}', space=sflag, size = 0x4, scoped, tag = 'scoped memory for tpu_custom_call.1']
    #allocation6 [shape = 'u8[4096]{0}', space=vmem, size = 0x1000, scoped, tag = 'input window, operand 1, single buffered']
    #allocation7 [shape = 's32[1]{0}', space=sflag, size = 0x4, scoped, tag = 'scoped memory for tpu_custom_call.1']
    #allocation8 [shape = 'u8[4096]{0}', space=vmem, size = 0x1000, scoped, tag = 'input window, operand 2, single buffered']
    #allocation9 [shape = 'u8[4096]{0}', space=vmem, size = 0x1000, scoped, tag = 'output window, operand 0, single buffered']
    %8 = vsyncpa [#allocation4], 0
    %9 = vsyncpa [#allocation7], 0
    %10 = vsyncpa [#allocation5], 0
    // Predicated region
    $region2: #{tpu_custom_call.1} parent=1 // pred_check
      _
    $region3: #{tpu_custom_call.1} parent=1 // pred_check_branch
      %12 = sbr.rel (0) target = $region5
    $region4: #{tpu_custom_call.1} parent=1 // pred_region
      %s14 = ssub.s32 128, 128
      %15 = vsyncadd [#allocation4], %s14
      %s17 = sshll.u32 [#allocation3], 4
      %s18 = int_to_ptr.vmem [resolvable:$true] %s17
      %20 = dma.hbm_to_vmem [thread:$0]  %s0, 128, %s18, [#allocation4]
    $region5: #{tpu_custom_call.1} parent=1 // pred_fallthru
      _
    // Predicated region
    $region6: #{tpu_custom_call.1} parent=1 // pred_check
      _
    $region7: #{tpu_custom_call.1} parent=1 // pred_check_branch
      %22 = sbr.rel (0) target = $region9
    $region8: #{tpu_custom_call.1} parent=1 // pred_region
      %s24 = ssub.s32 128, 128
      %25 = vsyncadd [#allocation7], %s24
      %s27 = sshll.u32 [#allocation6], 4
      %s28 = int_to_ptr.vmem [resolvable:$true] %s27
      %30 = dma.hbm_to_vmem [thread:$0]  %s1, 128, %s28, [#allocation7]
    $region9: #{tpu_custom_call.1} parent=1 // pred_fallthru
      _
    // Predicated region
    $region10: #{tpu_custom_call.1} parent=1 // pred_check
      _
    $region11: #{tpu_custom_call.1} parent=1 // pred_check_branch
      %32 = sbr.rel (0) target = $region13
    $region12: #{tpu_custom_call.1} parent=1 // pred_region
      %s34 = ssub.s32 128, 128
      %35 = vsyncadd [#allocation7], %s34
      %s37 = sshll.u32 [#allocation8], 4
      %s38 = int_to_ptr.vmem [resolvable:$true] %s37
      %40 = dma.hbm_to_vmem [thread:$0]  %s2, 128, %s38, [#allocation7]
    $region13: #{tpu_custom_call.1} parent=1 // pred_fallthru
      _
    // Predicated region
    $region14: #{tpu_custom_call.1} parent=1 // pred_check
      _
    $region15: #{tpu_custom_call.1} parent=1 // pred_check_branch
      %42 = sbr.rel (0) target = $region17
    $region16: #{tpu_custom_call.1} parent=1 // pred_region
      %43 = dma.done [#allocation4], 128
    $region17: #{tpu_custom_call.1} parent=1 // pred_fallthru
      _
    // Predicated region
    $region18: #{tpu_custom_call.1} parent=1 // pred_check
      _
    $region19: #{tpu_custom_call.1} parent=1 // pred_check_branch
      %45 = sbr.rel (0) target = $region21
    $region20: #{tpu_custom_call.1} parent=1 // pred_region
      %46 = dma.done [#allocation7], 128
    $region21: #{tpu_custom_call.1} parent=1 // pred_fallthru
      _
    // Predicated region
    $region22: #{tpu_custom_call.1} parent=1 // pred_check
      _
    $region23: #{tpu_custom_call.1} parent=1 // pred_check_branch
      %48 = sbr.rel (0) target = $region25
    $region24: #{tpu_custom_call.1} parent=1 // pred_region
      %49 = dma.done [#allocation7], 128
    $region25: #{tpu_custom_call.1} parent=1 // pred_fallthru
      _
    %p50 = scmp.eq.s32.totalorder 0, 0
    // Predicated region
    $region26: #{tpu_custom_call.1} parent=1 // pred_check
      %p51 = pneg %p50
    $region27: #{tpu_custom_call.1} parent=1 // pred_check_branch
      %53 = sbr.rel (%p51) target = $region29
    $region28: #{tpu_custom_call.1} parent=1 // pred_region
      %54 = vst [vmem:[#allocation2] sm:$0xff] 0.0
    $region29: #{tpu_custom_call.1} parent=1 // pred_fallthru
      _
    %v55 = vld [vmem:[#allocation3] sm:$0xff]
    %v56 = vld [vmem:[#allocation6] sm:$0xff]
    %v57 = vld [vmem:[#allocation8] sm:$0xff]
    %v58 = vrcp.pop %v56
    %v59 = vmul.f32 %v57, %v58
    %vm60 = vcmp.ne.f32.partialorder %v59, %v59
    %v61 = vsel %vm60, 0.0, %v59
    %vm62 = vcmp.eq.f32.partialorder %v61, inf
    %v63 = vsel %vm62, 0.0, %v61
    %v64 = vsub.f32 %v55, %v56
    %v65 = vmul.f32 %v64, %v63
    %v66 = vand.u32 2147483647, %v65
    %v67 = vld [vmem:[#allocation2] sm:$0xff]
    %v68 = vadd.f32 %v67, %v66
    %69 = vst [vmem:[#allocation2] sm:$0xff] %v68
    // Predicated region
    $region30: #{tpu_custom_call.1} parent=1 // pred_check
      %p70 = pneg %p50
    $region31: #{tpu_custom_call.1} parent=1 // pred_check_branch
      %72 = sbr.rel (%p70) target = $region33
    $region32: #{tpu_custom_call.1} parent=1 // pred_region
      %v73 = vld [vmem:[#allocation2] sm:$0xff]
      %74 = vadd.xlane.f32.xlu0 %v73
      %v75 = vpop.xlane.xlu0 %74
      %v76 = vrot.slane %v75, 4
      %v77 = vadd.f32 %v75, %v76
      %v78 = vrot.slane %v77, 2
      %v79 = vadd.f32 %v77, %v78
      %v80 = vrot.slane %v79, 1
      %v81 = vadd.f32 %v79, %v80
      %s82 = vtos %v81
      %v83 = vstv %s82
      %v84 = vadd.f32 %v83, 0.0
      %85 = vst [vmem:[#allocation9] sm:$0xff] %v84
    $region33: #{tpu_custom_call.1} parent=1 // pred_fallthru
      _
    // Predicated region
    $region34: #{tpu_custom_call.1} parent=1 // pred_check
      _
    $region35: #{tpu_custom_call.1} parent=1 // pred_check_branch
      %87 = sbr.rel (0) target = $region37
    $region36: #{tpu_custom_call.1} parent=1 // pred_region
      %s89 = ssub.s32 128, 128
      %90 = vsyncadd [#allocation5], %s89
      %s92 = sshll.u32 [#allocation9], 4
      %s93 = int_to_ptr.vmem [resolvable:$true] %s92
      %95 = dma.vmem_to_hbm [thread:$0]  %s93, 128, %s3, [#allocation5]
    $region37: #{tpu_custom_call.1} parent=1 // pred_fallthru
      _
    // Predicated region
    $region38: #{tpu_custom_call.1} parent=1 // pred_check
      _
    $region39: #{tpu_custom_call.1} parent=1 // pred_check_branch
      %97 = sbr.rel (0) target = $region41
    $region40: #{tpu_custom_call.1} parent=1 // pred_region
      %98 = dma.done [#allocation5], 128
    $region41: #{tpu_custom_call.1} parent=1 // pred_fallthru
      _
    %99 = vsyncpa [#allocation4], 1
    %100 = vsyncpa [#allocation7], 1
    %101 = vsyncpa [#allocation5], 1

</llo_original>
